<compile_context>
chip_gen: v6e
topology: v6e:2x2x1
jax: 0.10.0
libtpu: 0.0.40
codegen_flags: <defaults>
</compile_context>

<pallas_src>
import functools

import jax
import jax.numpy as jnp
from jax import lax
from jax.experimental import pallas as pl
from jax.experimental.pallas import tpu as pltpu


# ---------------------------------------------------------------------------
# Sampling: out = x + N(0, 1)
# ---------------------------------------------------------------------------
def _add_noise_kernel(x_ref, n_ref, o_ref):
    o_ref[...] = x_ref[...] + n_ref[...]


def _largest_aligned_divisor(dim: int, unit: int, max_tile: int) -> int:
    """Largest multiple of `unit` that divides `dim` and is <= max_tile.
    Falls back to the full dimension if `dim` is not a multiple of `unit`."""
    if dim % unit != 0:
        return dim
    t = min(max_tile, dim)
    t -= t % unit
    while dim % t != 0:
        t -= unit
    return t


def sampling(x: jax.Array, key: jax.Array) -> jax.Array:
    """feddep.Sampling: inputs + standard-normal noise of the same shape."""
    assert x.ndim == 2, "expected [rows, features]"
    M, N = x.shape
    noise = jax.random.normal(key, x.shape, dtype=x.dtype)

    # Small inputs: one block covering the whole array, no grid.
    if x.size * x.dtype.itemsize <= (2 << 20):
        return pl.pallas_call(
            _add_noise_kernel,
            out_shape=jax.ShapeDtypeStruct(x.shape, x.dtype),
        )(x, noise)

    # Large inputs: big lane-dense tiles (<= ~2 MiB f32 each) so the ~0.35 us
    # per-step grid overhead is amortized and stores are unmasked vst.
    tm = _largest_aligned_divisor(M, 8, 256)
    tn = _largest_aligned_divisor(N, 128, 2048)
    return pl.pallas_call(
        _add_noise_kernel,
        out_shape=jax.ShapeDtypeStruct(x.shape, x.dtype),
        grid=(M // tm, N // tn),
        in_specs=[
            pl.BlockSpec((tm, tn), lambda i, j: (i, j)),
            pl.BlockSpec((tm, tn), lambda i, j: (i, j)),
        ],
        out_specs=pl.BlockSpec((tm, tn), lambda i, j: (i, j)),
        compiler_params=pltpu.CompilerParams(
            dimension_semantics=("parallel", "parallel"),
        ),
    )(x, noise)


# ---------------------------------------------------------------------------
# Fused linear + activation (NumPredictor / EmbGenerator layers)
# ---------------------------------------------------------------------------
def _linear_kernel(x_ref, w_ref, b_ref, o_ref, *, activation):
    y = jnp.dot(x_ref[...], w_ref[...], preferred_element_type=jnp.float32)
    y = y + b_ref[...]
    if activation == "relu":
        y = jnp.maximum(y, 0.0)
    elif activation == "tanh":
        y = jnp.tanh(y)
    o_ref[...] = y.astype(o_ref.dtype)


def linear(x: jax.Array, w: jax.Array, b: jax.Array, activation: str = "none") -> jax.Array:
    """y = act(x @ w + b). Single full-array block: every matmul in the
    LocalDGen generator head is tiny (<= 2 MiB of weights), so a grid would be
    pure per-step overhead."""
    M, K = x.shape
    K2, N = w.shape
    assert K == K2
    b2 = b.reshape(1, N)
    return pl.pallas_call(
        functools.partial(_linear_kernel, activation=activation),
        out_shape=jax.ShapeDtypeStruct((M, N), x.dtype),
    )(x, w, b2)


# ---------------------------------------------------------------------------
# MendGraph: zero out generated embeddings beyond the predicted degree
# ---------------------------------------------------------------------------
def _mend_kernel(deg_ref, gen_ref, o_ref, *, num_pred, feat_shape):
    # deg_ref: [N, 1], gen_ref/o_ref: [N, num_pred * feat_shape]
    deg = jnp.clip(jnp.round(deg_ref[...]), 0.0, float(num_pred))          # [N, 1]
    col = lax.broadcasted_iota(jnp.int32, o_ref.shape, 1)                  # [N, P*F]
    pred_idx = (col // feat_shape).astype(jnp.float32)
    mask = pred_idx < deg                                                  # broadcast [N,1]
    o_ref[...] = jnp.where(mask, gen_ref[...], jnp.zeros_like(gen_ref[...]))


def mend_graph(degree: jax.Array, gen_feats: jax.Array, num_pred: int) -> jax.Array:
    num_nodes, pf = gen_feats.shape
    feat_shape = pf // num_pred
    out = pl.pallas_call(
        functools.partial(_mend_kernel, num_pred=num_pred, feat_shape=feat_shape),
        out_shape=jax.ShapeDtypeStruct((num_nodes, pf), gen_feats.dtype),
    )(degree, gen_feats)
    return out.reshape(num_nodes, num_pred, feat_shape)


# ---------------------------------------------------------------------------
# LocalDGen generator head forward
# ---------------------------------------------------------------------------
def local_dgen_forward(x, params, key, *, num_pred, feat_shape, training=False):
    # x: encoder (SAGE_Net) output — encoder itself not defined in the spec.
    degree = linear(x, params["w_reg"], params["b_reg"], activation="relu")   # NumPredictor
    z = sampling(x, key)                                                      # Sampling
    h = linear(z, params["w1"], params["b1"], activation="relu")              # fc1
    h = linear(h, params["w2"], params["b2"], activation="relu")              # fc2
    # TODO(synk): F.dropout is identity in eval mode (training=False); training-mode
    # dropout would take a Bernoulli mask as an extra elementwise-kernel input.
    gen_feat = linear(h, params["w3"], params["b3"], activation="tanh")       # fc_flat
    mend_feats = mend_graph(degree, gen_feat, num_pred)                       # MendGraph
    # TODO(synk): Classifier_F (nc_pred) not defined in the spec; omitted.
    return degree, gen_feat, mend_feats


if __name__ == "__main__":
    key = jax.random.PRNGKey(0)
    k_x, k_noise, k_big, k_w = jax.random.split(key, 4)

    num_nodes, gen_hidden, num_pred, emb_len = 8, 32, 5, 16

    x = jax.random.normal(k_x, (num_nodes, gen_hidden), dtype=jnp.float32)

    def init_linear(k, fan_in, fan_out):
        kw_, kb_ = jax.random.split(k)
        lim = 1.0 / float(fan_in) ** 0.5
        w = jax.random.uniform(kw_, (fan_in, fan_out), jnp.float32, -lim, lim)
        b = jax.random.uniform(kb_, (fan_out,), jnp.float32, -lim, lim)
        return w, b

    kws = jax.random.split(k_w, 4)
    w_reg, b_reg = init_linear(kws[0], gen_hidden, 1)
    w1, b1 = init_linear(kws[1], gen_hidden, 256)
    w2, b2 = init_linear(kws[2], 256, 2048)
    w3, b3 = init_linear(kws[3], 2048, num_pred * emb_len)
    params = dict(w_reg=w_reg, b_reg=b_reg, w1=w1, b1=b1, w2=w2, b2=b2, w3=w3, b3=b3)

    degree, gen_feat, mend = local_dgen_forward(
        x, params, k_noise, num_pred=num_pred, feat_shape=emb_len)
    degree, gen_feat, mend = jax.block_until_ready((degree, gen_feat, mend))

    assert degree.shape == (num_nodes, 1)
    assert gen_feat.shape == (num_nodes, num_pred * emb_len)
    assert mend.shape == (num_nodes, num_pred, emb_len)
    assert bool(jnp.all(jnp.isfinite(gen_feat)))
    assert bool(jnp.all(degree >= 0.0))
    assert float(jnp.max(jnp.abs(gen_feat))) <= 1.0 + 1e-6

    # Sampling exactness on the small (single-block) path.
    s_small = sampling(x, k_noise)
    ref_small = x + jax.random.normal(k_noise, x.shape, dtype=x.dtype)
    assert bool(jnp.allclose(s_small, ref_small)), "small sampling mismatch"

    # Sampling exactness on the large (tiled, multi-block) path.
    big = jax.random.normal(k_big, (512, 2048), dtype=jnp.float32)
    k_big_noise = jax.random.fold_in(k_big, 1)
    s_big = jax.block_until_ready(sampling(big, k_big_noise))
    ref_big = big + jax.random.normal(k_big_noise, big.shape, dtype=big.dtype)
    assert bool(jnp.allclose(s_big, ref_big)), "tiled sampling mismatch"

    # MendGraph reference check.
    deg_clipped = jnp.clip(jnp.round(degree[:, 0]), 0, num_pred)
    ref_mask = (jnp.arange(num_pred, dtype=jnp.float32)[None, :] < deg_clipped[:, None])
    ref_mend = gen_feat.reshape(num_nodes, num_pred, emb_len) * ref_mask[:, :, None]
    assert bool(jnp.allclose(mend, ref_mend)), "mend_graph mismatch"

    print("KERNEL_OK")
</pallas_src>

<mosaic_0001>
module attributes {stable_mosaic.version = 11 : i64} {
  func.func @_linear_kernel(%arg0: memref<8x32xf32, #tpu.memory_space<vmem>>, %arg1: memref<32x1xf32, #tpu.memory_space<vmem>>, %arg2: memref<1x1xf32, #tpu.memory_space<vmem>>, %arg3: memref<8x1xf32, #tpu.memory_space<vmem>>) attributes {dimension_semantics = [], scalar_prefetch = 0 : i64, scratch_operands = 0 : i64, tpu.core_type = #tpu.core_type<tc>} {
    %c0 = arith.constant 0 : index
    %c0_0 = arith.constant 0 : index
    %0 = vector.load %arg0[%c0, %c0_0] : memref<8x32xf32, #tpu.memory_space<vmem>>, vector<8x32xf32>
    %c0_1 = arith.constant 0 : index
    %c0_2 = arith.constant 0 : index
    %1 = vector.load %arg1[%c0_1, %c0_2] : memref<32x1xf32, #tpu.memory_space<vmem>>, vector<32x1xf32>
    %cst = arith.constant dense<0.000000e+00> : vector<8x1xf32>
    %2 = tpu.matmul %0, %1, %cst {dimension_numbers = #tpu.dot_dimension_numbers<[1], [0], [0], [1], [0, 0, 1, 1], [], []>} : vector<8x32xf32>, vector<32x1xf32>, vector<8x1xf32> -> vector<8x1xf32>
    %c0_3 = arith.constant 0 : index
    %c0_4 = arith.constant 0 : index
    %3 = vector.load %arg2[%c0_3, %c0_4] : memref<1x1xf32, #tpu.memory_space<vmem>>, vector<1x1xf32>
    %4 = vector.broadcast %3 : vector<1x1xf32> to vector<8x1xf32>
    %5 = arith.addf %2, %4 : vector<8x1xf32>
    %cst_5 = arith.constant 0.000000e+00 : f32
    %6 = vector.broadcast %cst_5 : f32 to vector<8x1xf32>
    %7 = arith.maximumf %5, %6 : vector<8x1xf32>
    %c0_6 = arith.constant 0 : index
    %c0_7 = arith.constant 0 : index
    %8 = vector.load %arg3[%c0_6, %c0_7] : memref<8x1xf32, #tpu.memory_space<vmem>>, vector<8x1xf32>
    tpu.vector_store %arg3[%c0_6, %c0_7], %7 {strides = array<i32>} : memref<8x1xf32, #tpu.memory_space<vmem>>, vector<8x1xf32>,
    return
  }
}

</mosaic_0001>

<llo_original>
// kernel: tpu_custom_call.1
$region0: #{tpu_custom_call.1}
  #allocation0 [shape = 'u32[]', space=smem, size = 0x4, offset = 0x4, fixed_abs, tag = 'smem constant byte address 0x4 - core index']
  #allocation1 [shape = 'u32[144,128]{1,0:T(1,128)}', space=vmem, size = 0x12000, scoped, tag = 'internal scratch']
  #allocation2 [shape = 'f32[1,1]{1,0:T(1,128)S(1)}', space=vmem, size = 0x200, scoped, tag = 'scoped memory for tpu_custom_call.1']
  %s0 = inlined_call_operand.vmem [shape: f32[8,32], index: 0, kind: input, shape index: {}]
  %s1 = inlined_call_operand.vmem [shape: f32[32,1], index: 1, kind: input, shape index: {}]
  %s2 = inlined_call_operand.<no memory space> [shape: f32[1,1], index: 2, kind: input, shape index: {}]
  %s3 = inlined_call_operand.vmem [shape: f32[8,1], index: 3, kind: output, shape index: {}]
  %s4 = sld [smem:[#allocation0]]
  $region22: #{tpu_custom_call.1} parent=0
    _
  %s6 = ssub.s32 1, %s4
  %s7 = scalar_select 0, %s6, %s4
  %v8 = vstv %s2
  %9 = vst [vmem:[#allocation2] sm:$0x1] %v8
  // Predicated region
  $region2: #{tpu_custom_call.1} parent=0 // pred_check
    _
  $region3: #{tpu_custom_call.1} parent=0 // pred_check_branch
    %11 = sbr.rel (0) target = $region5
  $region4: #{tpu_custom_call.1} parent=0 // pred_region
    _
  $region5: #{tpu_custom_call.1} parent=0 // pred_fallthru
    _
  // Predicated region
  $region6: #{tpu_custom_call.1} parent=0 // pred_check
    _
  $region7: #{tpu_custom_call.1} parent=0 // pred_check_branch
    %13 = sbr.rel (0) target = $region9
  $region8: #{tpu_custom_call.1} parent=0 // pred_region
    _
  $region9: #{tpu_custom_call.1} parent=0 // pred_fallthru
    _
  // Predicated region
  $region10: #{tpu_custom_call.1} parent=0 // pred_check
    _
  $region11: #{tpu_custom_call.1} parent=0 // pred_check_branch
    %15 = sbr.rel (0) target = $region13
  $region12: #{tpu_custom_call.1} parent=0 // pred_region
    _
  $region13: #{tpu_custom_call.1} parent=0 // pred_fallthru
    _
  %v16 = vld [vmem:[%s0] sm:$0xff]
  %v17 = vld [vmem:[%s1] sm:$0xff]
  %v18 = vld [vmem:[%s1 + $0x8] sm:$0xff]
  %v19 = vld [vmem:[%s1 + $0x10] sm:$0xff]
  %v20 = vld [vmem:[%s1 + $0x18] sm:$0xff]
  %v21 = vld [vmem:[#allocation2] sm:$0x1]
  %v23 = vlaneseq
  %v24 = vshrl.u32 %v23, 7
  %v25 = vsub.s32 0, %v24
  %v26 = vrot.slane %v21, %v25
  %vm28 = vcmask 261120
  %v30 = vsel %vm28, %v16, 0
  %32 = vmatprep.subr.mxu0 0.0
  %33 = vmatpush1.msra.mxu0 0.0
  %34 = vmatprep.subr.mxu0 0.0
  %35 = vmatpush1.msra.mxu0 0.0
  %36 = vmatprep.subr.mxu0 0.0
  %37 = vmatpush1.msra.mxu0 0.0
  %38 = vmatprep.subr.mxu0 0.0
  %39 = vmatpush1.msra.mxu0 0.0
  %40 = vmatprep.subr.mxu0 0.0
  %41 = vmatpush1.msra.mxu0 0.0
  %42 = vmatprep.subr.mxu0 0.0
  %43 = vmatpush1.msra.mxu0 0.0
  %44 = vmatprep.subr.mxu0 0.0
  %45 = vmatpush1.msra.mxu0 0.0
  %46 = vmatprep.subr.mxu0 0.0
  %47 = vmatpush1.msra.mxu0 0.0
  %48 = vmatprep.subr.mxu0 0.0
  %49 = vmatpush1.msra.mxu0 0.0
  %50 = vmatprep.subr.mxu0 0.0
  %51 = vmatpush1.msra.mxu0 0.0
  %52 = vmatprep.subr.mxu0 0.0
  %53 = vmatpush1.msra.mxu0 0.0
  %54 = vmatprep.subr.mxu0 0.0
  %55 = vmatpush1.msra.mxu0 0.0
  %56 = vmatprep.subr.mxu0 0.0
  %57 = vmatpush1.msra.mxu0 %v20
  %58 = vmatprep.subr.mxu0 0.0
  %59 = vmatpush1.msra.mxu0 %v19
  %60 = vmatprep.subr.mxu0 0.0
  %61 = vmatpush1.msra.mxu0 %v18
  %62 = vmatprep.subr.mxu0 0.0
  %63 = vmatpush1.msra.mxu0 %v17
  %64 = vmatprep.subr.mxu0 0.0
  %65 = vmatpush2.msra.mxu0 0.0
  %66 = vmatprep.subr.mxu0 0.0
  %67 = vmatpush2.msra.mxu0 0.0
  %68 = vmatprep.subr.mxu0 0.0
  %69 = vmatpush2.msra.mxu0 0.0
  %70 = vmatprep.subr.mxu0 0.0
  %71 = vmatpush2.msra.mxu0 0.0
  %72 = vmatprep.subr.mxu0 0.0
  %73 = vmatpush2.msra.mxu0 0.0
  %74 = vmatprep.subr.mxu0 0.0
  %75 = vmatpush2.msra.mxu0 0.0
  %76 = vmatprep.subr.mxu0 0.0
  %77 = vmatpush2.msra.mxu0 0.0
  %78 = vmatprep.subr.mxu0 0.0
  %79 = vmatpush2.msra.mxu0 0.0
  %80 = vmatprep.subr.mxu0 0.0
  %81 = vmatpush2.msra.mxu0 0.0
  %82 = vmatprep.subr.mxu0 0.0
  %83 = vmatpush2.msra.mxu0 0.0
  %84 = vmatprep.subr.mxu0 0.0
  %85 = vmatpush2.msra.mxu0 0.0
  %86 = vmatprep.subr.mxu0 0.0
  %87 = vmatpush2.msra.mxu0 0.0
  %88 = vmatprep.subr.mxu0 0.0
  %89 = vmatpush2.msra.mxu0 0.0
  %90 = vmatprep.subr.mxu0 0.0
  %91 = vmatpush2.msra.mxu0 0.0
  %92 = vmatprep.subr.mxu0 0.0
  %93 = vmatpush2.msra.mxu0 0.0
  %94 = vmatprep.subr.mxu0 0.0
  %95 = vmatpush2.msra.mxu0 0.0
  %96 = vmatprep.mubr.f32.mxu0 0.0
  %97 = vmatmul.mubr.f32.gmra.mxu0 %v30
  %v98 = vpop.f32.mrf.mxu0
  %v99 = vadd.f32 %v26, %v98
  %v100 = vpop.f32.mrf.mxu0
  %101 = vdwg.mxu0
  %v102 = vmax.f32 %v99, 0.0
  %vm103 = vcmask 7168
  %104 = vst.msk [vmem:[%s3] sm:$0xff] %vm103, %v102
  // Predicated region
  $region14: #{tpu_custom_call.1} parent=0 // pred_check
    _
  $region15: #{tpu_custom_call.1} parent=0 // pred_check_branch
    %106 = sbr.rel (0) target = $region17
  $region16: #{tpu_custom_call.1} parent=0 // pred_region
    _
  $region17: #{tpu_custom_call.1} parent=0 // pred_fallthru
    _
  // Predicated region
  $region18: #{tpu_custom_call.1} parent=0 // pred_check
    _
  $region19: #{tpu_custom_call.1} parent=0 // pred_check_branch
    %108 = sbr.rel (0) target = $region21
  $region20: #{tpu_custom_call.1} parent=0 // pred_region
    _
  $region21: #{tpu_custom_call.1} parent=0 // pred_fallthru
    _

</llo_original>
